<compile_context>
chip_gen: v5e
topology: v5e:2x2
jax: 0.10.0
libtpu: 0.0.40
codegen_flags: <defaults>
</compile_context>

<pallas_src>
import jax
import jax.numpy as jnp
from jax.experimental import pallas as pl
from jax.experimental.pallas import tpu as pltpu

LANE = 128


def _round_up(x, m):
    return (x + m - 1) // m * m


# ------------------------------------------------------------------ kernels --

def _transform_kernel(x_ref, w_ref, o_ref):
    """H = X @ W for one row tile (W/b resident across the grid)."""
    o_ref[...] = jnp.dot(
        x_ref[...], w_ref[...], preferred_element_type=jnp.float32
    ).astype(o_ref.dtype)


def _aggregate_kernel(a_ref, h_ref, b_ref, o_ref, acc_ref):
    """O = relu(A @ H + b), tiled over (row tiles, contraction tiles)."""
    k = pl.program_id(1)

    @pl.when(k == 0)
    def _():
        acc_ref[...] = jnp.zeros_like(acc_ref)

    # bf16 x bf16 -> f32 accumulate on the MXU.
    acc_ref[...] += jnp.dot(
        a_ref[...], h_ref[...], preferred_element_type=jnp.float32
    )

    @pl.when(k == pl.num_programs(1) - 1)
    def _():
        o_ref[...] = jnp.maximum(acc_ref[...] + b_ref[...], 0.0).astype(o_ref.dtype)


# ----------------------------------------------------------------- wrappers --

def gcn_layer(a_bf16, x, w, b, *, tm, tk):
    """One GraphConv layer on padded operands.

    a_bf16: (N_pad, N_pad)    bf16 normalized adjacency
    x:      (N_pad, Fin_pad)  f32 node features
    w:      (Fin_pad, Fout_pad) f32 weight
    b:      (1, Fout_pad)     f32 bias
    returns (N_pad, Fout_pad) f32
    """
    n_pad = a_bf16.shape[0]
    fin_pad = x.shape[1]
    fout_pad = w.shape[1]

    # Stage 1: feature transform, hoisted out of the contraction loop so the
    # X@W work is done exactly once per layer.
    h = pl.pallas_call(
        _transform_kernel,
        out_shape=jax.ShapeDtypeStruct((n_pad, fout_pad), jnp.bfloat16),
        grid=(n_pad // tm,),
        in_specs=[
            pl.BlockSpec((tm, fin_pad), lambda i: (i, 0)),
            pl.BlockSpec((fin_pad, fout_pad), lambda i: (0, 0)),  # resident
        ],
        out_specs=pl.BlockSpec((tm, fout_pad), lambda i: (i, 0)),
        compiler_params=pltpu.CompilerParams(
            dimension_semantics=("parallel",)),
    )(x, w)

    # Stage 2: tiled neighbor aggregation with an f32 VMEM accumulator and
    # bias + relu fused into the finalize step of the contraction.
    out = pl.pallas_call(
        _aggregate_kernel,
        out_shape=jax.ShapeDtypeStruct((n_pad, fout_pad), jnp.float32),
        grid=(n_pad // tm, n_pad // tk),
        in_specs=[
            pl.BlockSpec((tm, tk), lambda i, k: (i, k)),          # A tile
            pl.BlockSpec((tk, fout_pad), lambda i, k: (k, 0)),    # H tile
            pl.BlockSpec((1, fout_pad), lambda i, k: (0, 0)),     # bias resident
        ],
        out_specs=pl.BlockSpec((tm, fout_pad), lambda i, k: (i, 0)),
        scratch_shapes=[pltpu.VMEM((tm, fout_pad), jnp.float32)],
        compiler_params=pltpu.CompilerParams(
            dimension_semantics=("parallel", "arbitrary")),
    )(a_bf16, h, b)
    return out


def _xavier_uniform(key, fan_in, fan_out):
    limit = jnp.sqrt(6.0 / (fan_in + fan_out))
    return jax.random.uniform(key, (fan_in, fan_out), jnp.float32,
                              minval=-limit, maxval=limit)


class GCNEncoderPallas:
    """Mirror of the PyTorch GCNEncoder (activation=relu, k >= 2)."""

    def __init__(self, in_features: int, out_features: int, k: int = 2,
                 key=jax.random.PRNGKey(0)):
        assert k >= 2
        self.in_features = in_features
        self.out_features = out_features
        dims = [in_features, 2 * out_features]
        for _ in range(1, k - 1):
            dims.append(2 * out_features)
        dims.append(out_features)
        self.dims = dims

        self.weights = []
        self.biases = []
        keys = jax.random.split(key, len(dims) - 1)
        for i in range(len(dims) - 1):
            # DGL GraphConv init: xavier_uniform_ weight, zero bias.
            self.weights.append(_xavier_uniform(keys[i], dims[i], dims[i + 1]))
            self.biases.append(jnp.zeros((1, dims[i + 1]), jnp.float32))

    def __call__(self, a_norm, x, *, tile: int = 512):
        n = x.shape[0]
        assert a_norm.shape == (n, n)
        assert x.shape[1] == self.in_features

        # 128-aligned row/contraction tiles, capped so double-buffered bf16
        # A tiles stay well inside default scoped VMEM on every generation.
        tm = min(tile, _round_up(n, LANE))
        tk = tm
        n_pad = _round_up(n, tm)

        # Lane-dense (128-padded) feature widths.
        dims_pad = [_round_up(d, LANE) for d in self.dims]

        # bf16 adjacency halves HBM / VMEM traffic on the mem-bound A matmul.
        a_pad = jnp.zeros((n_pad, n_pad), jnp.bfloat16)
        a_pad = a_pad.at[:n, :n].set(a_norm.astype(jnp.bfloat16))

        h = jnp.zeros((n_pad, dims_pad[0]), jnp.float32)
        h = h.at[:n, :self.dims[0]].set(x.astype(jnp.float32))

        for li, (w, b) in enumerate(zip(self.weights, self.biases)):
            fin_p, fout_p = dims_pad[li], dims_pad[li + 1]
            w_pad = jnp.zeros((fin_p, fout_p), jnp.float32)
            w_pad = w_pad.at[:w.shape[0], :w.shape[1]].set(w)
            b_pad = jnp.zeros((1, fout_p), jnp.float32)
            b_pad = b_pad.at[:, :b.shape[1]].set(b)
            h = gcn_layer(a_pad, h, w_pad, b_pad, tm=tm, tk=tk)

        return h[:n, :self.out_features]


def build_normalized_adjacency(key, n):
    """Random symmetric graph with self-loops -> D^{-1/2} A D^{-1/2}."""
    bern = jax.random.bernoulli(key, p=0.3, shape=(n, n)).astype(jnp.float32)
    a = jnp.maximum(bern, bern.T)                       # symmetric
    a = jnp.maximum(a, jnp.eye(n, dtype=jnp.float32))   # self-loops (no 0-degree)
    deg = a.sum(axis=1)
    d_inv_sqrt = 1.0 / jnp.sqrt(deg)
    return d_inv_sqrt[:, None] * a * d_inv_sqrt[None, :]


if __name__ == "__main__":
    key = jax.random.PRNGKey(0)
    k_graph, k_feat, k_param = jax.random.split(key, 3)

    N = 32            # number of graph nodes
    IN_FEATURES = 16
    OUT_FEATURES = 8
    K = 2             # number of GraphConv layers

    a_norm = build_normalized_adjacency(k_graph, N)
    x = jax.random.normal(k_feat, (N, IN_FEATURES), jnp.float32)

    encoder = GCNEncoderPallas(IN_FEATURES, OUT_FEATURES, k=K, key=k_param)
    out = jax.block_until_ready(encoder(a_norm, x))

    # Plain-f32 JAX reference (same math).  The kernel uses bf16 A / H
    # operands with f32 accumulation, so the tolerance is relaxed accordingly.
    ref = x
    for w, b in zip(encoder.weights, encoder.biases):
        ref = jnp.maximum(a_norm @ ref @ w + b, 0.0)

    assert out.shape == (N, OUT_FEATURES)
    max_err = float(jnp.max(jnp.abs(out - ref)))
    assert jnp.allclose(out, ref, atol=5e-2, rtol=5e-2), max_err

    print("KERNEL_OK")
</pallas_src>

<mosaic_0001>
module attributes {stable_mosaic.version = 11 : i64} {
  func.func @_transform_kernel(%arg0: i32, %arg1: memref<128x128xf32, #tpu.memory_space<vmem>>, %arg2: memref<128x128xf32, #tpu.memory_space<vmem>>, %arg3: memref<128x128xbf16, #tpu.memory_space<vmem>>) attributes {dimension_semantics = [#tpu.dimension_semantics<parallel>], iteration_bounds = array<i64: 1>, scalar_prefetch = 0 : i64, scratch_operands = 0 : i64, tpu.core_type = #tpu.core_type<tc>, window_params = [{transform_indices = @transform_0, window_bounds = array<i64: 128, 128>}, {pipeline_mode = #tpu.pipeline_mode<synchronous>, transform_indices = @transform_1, window_bounds = array<i64: 128, 128>}, {transform_indices = @transform_2, window_bounds = array<i64: 128, 128>}]} {
    %c0 = arith.constant 0 : index
    %c0_0 = arith.constant 0 : index
    %0 = vector.load %arg1[%c0, %c0_0] : memref<128x128xf32, #tpu.memory_space<vmem>>, vector<128x128xf32>
    %c0_1 = arith.constant 0 : index
    %c0_2 = arith.constant 0 : index
    %1 = vector.load %arg2[%c0_1, %c0_2] : memref<128x128xf32, #tpu.memory_space<vmem>>, vector<128x128xf32>
    %cst = arith.constant dense<0.000000e+00> : vector<128x128xf32>
    %2 = tpu.matmul %0, %1, %cst {dimension_numbers = #tpu.dot_dimension_numbers<[1], [0], [0], [1], [0, 0, 1, 1], [], []>} : vector<128x128xf32>, vector<128x128xf32>, vector<128x128xf32> -> vector<128x128xf32>
    %3 = arith.truncf %2 : vector<128x128xf32> to vector<128x128xbf16>
    %c0_3 = arith.constant 0 : index
    %c0_4 = arith.constant 0 : index
    %4 = vector.load %arg3[%c0_3, %c0_4] : memref<128x128xbf16, #tpu.memory_space<vmem>>, vector<128x128xbf16>
    tpu.vector_store %arg3[%c0_3, %c0_4], %3 {strides = array<i32>} : memref<128x128xbf16, #tpu.memory_space<vmem>>, vector<128x128xbf16>,
    return
  }
  func.func @transform_0(%arg0: i32) -> (i32, i32) {
    %c0_i32 = arith.constant 0 : i32
    %c0_i32_0 = arith.constant 0 : i32
    return %arg0, %c0_i32 : i32, i32
  }
  func.func @transform_1(%arg0: i32) -> (i32, i32) {
    %c0_i32 = arith.constant 0 : i32
    %c0_i32_0 = arith.constant 0 : i32
    %c0_i32_1 = arith.constant 0 : i32
    return %c0_i32, %c0_i32_0 : i32, i32
  }
  func.func @transform_2(%arg0: i32) -> (i32, i32) {
    %c0_i32 = arith.constant 0 : i32
    %c0_i32_0 = arith.constant 0 : i32
    return %arg0, %c0_i32 : i32, i32
  }
}

</mosaic_0001>

<llo_original>
// kernel: tpu_custom_call.1
$region0: #{tpu_custom_call.1}
  #allocation0 [shape = 'u32[]', space=smem, size = 0x4, offset = 0x4, fixed_abs, tag = 'smem constant byte address 0x4 - core index']
  #allocation1 [shape = 'u32[72,128]{1,0:T(1,128)}', space=vmem, size = 0x9000, scoped, tag = 'internal scratch']
  %s0 = inlined_call_operand.hbm [shape: f32[128,128], index: 0, kind: input, shape index: {}]
  %s1 = inlined_call_operand.hbm [shape: f32[128,128], index: 1, kind: input, shape index: {}]
  %s2 = inlined_call_operand.hbm [shape: bf16[128,128], index: 2, kind: output, shape index: {}]
  %s3 = sld [smem:[#allocation0]]
  $region26: #{tpu_custom_call.1} parent=0
    _
  %s5 = ssub.s32 1, %s3
  %s6 = scalar_select 0, %s5, %s3
  $region1: #{tpu_custom_call.1} parent=0
    #allocation2 [shape = 'u8[65536]{0}', space=vmem, size = 0x10000, scoped, tag = 'input window, operand 0, single buffered']
    #allocation3 [shape = 's32[1]{0}', space=sflag, size = 0x4, scoped, tag = 'scoped memory for tpu_custom_call.1']
    #allocation4 [shape = 's32[1]{0}', space=sflag, size = 0x4, scoped, tag = 'scoped memory for tpu_custom_call.1']
    #allocation5 [shape = 'u8[65536]{0}', space=vmem, size = 0x10000, scoped, tag = 'input window, operand 1, single buffered']
    #allocation6 [shape = 's32[1]{0}', space=sflag, size = 0x4, scoped, tag = 'scoped memory for tpu_custom_call.1']
    #allocation7 [shape = 'u8[32768]{0}', space=vmem, size = 0x8000, scoped, tag = 'output window, operand 0, single buffered']
    %7 = vsyncpa [#allocation3], 0
    %8 = vsyncpa [#allocation6], 0
    %9 = vsyncpa [#allocation4], 0
    // Predicated region
    $region2: #{tpu_custom_call.1} parent=1 // pred_check
      _
    $region3: #{tpu_custom_call.1} parent=1 // pred_check_branch
      %11 = sbr.rel (0) target = $region5
    $region4: #{tpu_custom_call.1} parent=1 // pred_region
      %13 = vsyncadd [#allocation3], 0
      %s14 = sshll.u32 %s0, 4
      %s15 = int_to_ptr.hbm [resolvable:$true] %s14
      %s16 = sshll.u32 [#allocation2], 4
      %s17 = int_to_ptr.vmem [resolvable:$true] %s16
      %22 = dma.hbm_to_vmem [thread:$0]  %s15, 2048, %s17, [#allocation3], 128, 128, 8
    $region5: #{tpu_custom_call.1} parent=1 // pred_fallthru
      _
    // Predicated region
    $region6: #{tpu_custom_call.1} parent=1 // pred_check
      _
    $region7: #{tpu_custom_call.1} parent=1 // pred_check_branch
      %24 = sbr.rel (0) target = $region9
    $region8: #{tpu_custom_call.1} parent=1 // pred_region
      %26 = vsyncadd [#allocation6], 0
      %s27 = sshll.u32 %s1, 4
      %s28 = int_to_ptr.hbm [resolvable:$true] %s27
      %s29 = sshll.u32 [#allocation5], 4
      %s30 = int_to_ptr.vmem [resolvable:$true] %s29
      %35 = dma.hbm_to_vmem [thread:$0]  %s28, 2048, %s30, [#allocation6], 128, 128, 8
    $region9: #{tpu_custom_call.1} parent=1 // pred_fallthru
      _
    // Predicated region
    $region10: #{tpu_custom_call.1} parent=1 // pred_check
      _
    $region11: #{tpu_custom_call.1} parent=1 // pred_check_branch
      %37 = sbr.rel (0) target = $region13
    $region12: #{tpu_custom_call.1} parent=1 // pred_region
      %39 = dma.done [#allocation3], 2048
    $region13: #{tpu_custom_call.1} parent=1 // pred_fallthru
      _
    // Predicated region
    $region14: #{tpu_custom_call.1} parent=1 // pred_check
      _
    $region15: #{tpu_custom_call.1} parent=1 // pred_check_branch
      %41 = sbr.rel (0) target = $region17
    $region16: #{tpu_custom_call.1} parent=1 // pred_region
      %43 = dma.done [#allocation6], 2048
    $region17: #{tpu_custom_call.1} parent=1 // pred_fallthru
      _
    %v44 = vld [vmem:[#allocation2] sm:$0xff]
    %v45 = vld [vmem:[#allocation2 + $0x8] sm:$0xff]
    %v46 = vld [vmem:[#allocation2 + $0x10] sm:$0xff]
    %v47 = vld [vmem:[#allocation2 + $0x18] sm:$0xff]
    %v48 = vld [vmem:[#allocation2 + $0x20] sm:$0xff]
    %v49 = vld [vmem:[#allocation2 + $0x28] sm:$0xff]
    %v50 = vld [vmem:[#allocation2 + $0x30] sm:$0xff]
    %v51 = vld [vmem:[#allocation2 + $0x38] sm:$0xff]
    %v52 = vld [vmem:[#allocation2 + $0x40] sm:$0xff]
    %v53 = vld [vmem:[#allocation2 + $0x48] sm:$0xff]
    %v54 = vld [vmem:[#allocation2 + $0x50] sm:$0xff]
    %v55 = vld [vmem:[#allocation2 + $0x58] sm:$0xff]
    %v56 = vld [vmem:[#allocation2 + $0x60] sm:$0xff]
    %v57 = vld [vmem:[#allocation2 + $0x68] sm:$0xff]
    %v58 = vld [vmem:[#allocation2 + $0x70] sm:$0xff]
    %v59 = vld [vmem:[#allocation2 + $0x78] sm:$0xff]
    %v60 = vld [vmem:[#allocation5] sm:$0xff]
    %v61 = vld [vmem:[#allocation5 + $0x8] sm:$0xff]
    %v62 = vld [vmem:[#allocation5 + $0x10] sm:$0xff]
    %v63 = vld [vmem:[#allocation5 + $0x18] sm:$0xff]
    %v64 = vld [vmem:[#allocation5 + $0x20] sm:$0xff]
    %v65 = vld [vmem:[#allocation5 + $0x28] sm:$0xff]
    %v66 = vld [vmem:[#allocation5 + $0x30] sm:$0xff]
    %v67 = vld [vmem:[#allocation5 + $0x38] sm:$0xff]
    %v68 = vld [vmem:[#allocation5 + $0x40] sm:$0xff]
    %v69 = vld [vmem:[#allocation5 + $0x48] sm:$0xff]
    %v70 = vld [vmem:[#allocation5 + $0x50] sm:$0xff]
    %v71 = vld [vmem:[#allocation5 + $0x58] sm:$0xff]
    %v72 = vld [vmem:[#allocation5 + $0x60] sm:$0xff]
    %v73 = vld [vmem:[#allocation5 + $0x68] sm:$0xff]
    %v74 = vld [vmem:[#allocation5 + $0x70] sm:$0xff]
    %v75 = vld [vmem:[#allocation5 + $0x78] sm:$0xff]
    %76 = vmatpush.msra.mxu0 %v75
    %77 = vmatpush.msra.mxu0 %v74
    %78 = vmatpush.msra.mxu0 %v73
    %79 = vmatpush.msra.mxu0 %v72
    %80 = vmatpush.msra.mxu0 %v71
    %81 = vmatpush.msra.mxu0 %v70
    %82 = vmatpush.msra.mxu0 %v69
    %83 = vmatpush.msra.mxu0 %v68
    %84 = vmatpush.msra.mxu0 %v67
    %85 = vmatpush.msra.mxu0 %v66
    %86 = vmatpush.msra.mxu0 %v65
    %87 = vmatpush.msra.mxu0 %v64
    %88 = vmatpush.msra.mxu0 %v63
    %89 = vmatpush.msra.mxu0 %v62
    %90 = vmatpush.msra.mxu0 %v61
    %91 = vmatpush.msra.mxu0 %v60
    %92 = vmatmul.f32.gmra.mxu0 %v44
    %v93 = vpop.f32.mrf.mxu0
    %v94 = vadd.f32 0.0, %v93
    %95 = vmatmul.f32.gmra.mxu0 %v45
    %v96 = vpop.f32.mrf.mxu0
    %v97 = vadd.f32 0.0, %v96
    %98 = vmatmul.f32.gmra.mxu0 %v46
    %v99 = vpop.f32.mrf.mxu0
    %v100 = vadd.f32 0.0, %v99
    %101 = vmatmul.f32.gmra.mxu0 %v47
    %v102 = vpop.f32.mrf.mxu0
    %v103 = vadd.f32 0.0, %v102
    %104 = vmatmul.f32.gmra.mxu0 %v48
    %v105 = vpop.f32.mrf.mxu0
    %v106 = vadd.f32 0.0, %v105
    %107 = vmatmul.f32.gmra.mxu0 %v49
    %v108 = vpop.f32.mrf.mxu0
    %v109 = vadd.f32 0.0, %v108
    %110 = vmatmul.f32.gmra.mxu0 %v50
    %v111 = vpop.f32.mrf.mxu0
    %v112 = vadd.f32 0.0, %v111
    %113 = vmatmul.f32.gmra.mxu0 %v51
    %v114 = vpop.f32.mrf.mxu0
    %v115 = vadd.f32 0.0, %v114
    %116 = vmatmul.f32.gmra.mxu0 %v52
    %v117 = vpop.f32.mrf.mxu0
    %v118 = vadd.f32 0.0, %v117
    %119 = vmatmul.f32.gmra.mxu0 %v53
    %v120 = vpop.f32.mrf.mxu0
    %v121 = vadd.f32 0.0, %v120
    %122 = vmatmul.f32.gmra.mxu0 %v54
    %v123 = vpop.f32.mrf.mxu0
    %v124 = vadd.f32 0.0, %v123
    %125 = vmatmul.f32.gmra.mxu0 %v55
    %v126 = vpop.f32.mrf.mxu0
    %v127 = vadd.f32 0.0, %v126
    %128 = vmatmul.f32.gmra.mxu0 %v56
    %v129 = vpop.f32.mrf.mxu0
    %v130 = vadd.f32 0.0, %v129
    %131 = vmatmul.f32.gmra.mxu0 %v57
    %v132 = vpop.f32.mrf.mxu0
    %v133 = vadd.f32 0.0, %v132
    %134 = vmatmul.f32.gmra.mxu0 %v58
    %v135 = vpop.f32.mrf.mxu0
    %v136 = vadd.f32 0.0, %v135
    %137 = vmatmul.f32.gmra.mxu0 %v59
    %v138 = vpop.f32.mrf.mxu0
    %v139 = vadd.f32 0.0, %v138
    %140 = vdwg.mxu0
    %v141 = vpack.c.bf16 %v94, %v94
    %v142 = vpack.c.bf16 %v97, %v97
    %v143 = vpack.c.bf16 %v100, %v100
    %v144 = vpack.c.bf16 %v103, %v103
    %v145 = vpack.c.bf16 %v106, %v106
    %v146 = vpack.c.bf16 %v109, %v109
    %v147 = vpack.c.bf16 %v112, %v112
    %v148 = vpack.c.bf16 %v115, %v115
    %v149 = vpack.c.bf16 %v118, %v118
    %v150 = vpack.c.bf16 %v121, %v121
    %v151 = vpack.c.bf16 %v124, %v124
    %v152 = vpack.c.bf16 %v127, %v127
    %v153 = vpack.c.bf16 %v130, %v130
    %v154 = vpack.c.bf16 %v133, %v133
    %v155 = vpack.c.bf16 %v136, %v136
    %v156 = vpack.c.bf16 %v139, %v139
    %157 = vst [vmem:[#allocation7] sm:$0xf] %v141
    %158 = vst [vmem:[#allocation7 + $0x4] sm:$0xf] %v142
    %159 = vst [vmem:[#allocation7 + $0x8] sm:$0xf] %v143
    %160 = vst [vmem:[#allocation7 + $0xc] sm:$0xf] %v144
    %161 = vst [vmem:[#allocation7 + $0x10] sm:$0xf] %v145
    %162 = vst [vmem:[#allocation7 + $0x14] sm:$0xf] %v146
    %163 = vst [vmem:[#allocation7 + $0x18] sm:$0xf] %v147
    %164 = vst [vmem:[#allocation7 + $0x1c] sm:$0xf] %v148
    %165 = vst [vmem:[#allocation7 + $0x20] sm:$0xf] %v149
    %166 = vst [vmem:[#allocation7 + $0x24] sm:$0xf] %v150
    %167 = vst [vmem:[#allocation7 + $0x28] sm:$0xf] %v151
    %168 = vst [vmem:[#allocation7 + $0x2c] sm:$0xf] %v152
    %169 = vst [vmem:[#allocation7 + $0x30] sm:$0xf] %v153
    %170 = vst [vmem:[#allocation7 + $0x34] sm:$0xf] %v154
    %171 = vst [vmem:[#allocation7 + $0x38] sm:$0xf] %v155
    %172 = vst [vmem:[#allocation7 + $0x3c] sm:$0xf] %v156
    // Predicated region
    $region18: #{tpu_custom_call.1} parent=1 // pred_check
      _
    $region19: #{tpu_custom_call.1} parent=1 // pred_check_branch
      %174 = sbr.rel (0) target = $region21
    $region20: #{tpu_custom_call.1} parent=1 // pred_region
      %176 = vsyncadd [#allocation4], 0
      %s177 = sshll.u32 [#allocation7], 4
      %s178 = int_to_ptr.vmem [resolvable:$true] %s177
      %s179 = sshll.u32 %s2, 4
      %s180 = int_to_ptr.hbm [resolvable:$true] %s179
      %185 = dma.vmem_to_hbm [thread:$0]  %s178, 1024, %s180, [#allocation4], 64, 64, 4
    $region21: #{tpu_custom_call.1} parent=1 // pred_fallthru
      _
    // Predicated region
    $region22: #{tpu_custom_call.1} parent=1 // pred_check
      _
    $region23: #{tpu_custom_call.1} parent=1 // pred_check_branch
      %187 = sbr.rel (0) target = $region25
    $region24: #{tpu_custom_call.1} parent=1 // pred_region
      %189 = dma.done [#allocation4], 1024
    $region25: #{tpu_custom_call.1} parent=1 // pred_fallthru
      _
    %190 = vsyncpa [#allocation3], 1
    %191 = vsyncpa [#allocation6], 1
    %192 = vsyncpa [#allocation4], 1

</llo_original>
